<compile_context>
chip_gen: v5e
topology: v5e:2x2
jax: 0.10.0
libtpu: 0.0.40
codegen_flags: <defaults>
</compile_context>

<pallas_src>
import jax
import jax.numpy as jnp
from jax.experimental import pallas as pl
from jax.experimental.pallas import tpu as pltpu

D_IN, H1, H2, H3, D_OUT = 425, 64, 32, 16, 1


def _mlp_kernel(x_ref, w1_ref, b1_ref, w2_ref, b2_ref,
                w3_ref, b3_ref, w4_ref, b4_ref, o_ref):
    # x_ref: (tm, 425) bf16 batch tile. Weights bf16 (VMEM-resident across
    # the grid), biases f32. All dots accumulate in f32 on the MXU.
    h = jnp.dot(x_ref[...], w1_ref[...], preferred_element_type=jnp.float32)
    h = jnp.maximum(h + b1_ref[...], 0.0)

    h = jnp.dot(h.astype(jnp.bfloat16), w2_ref[...],
                preferred_element_type=jnp.float32)
    h = jnp.maximum(h + b2_ref[...], 0.0)

    h = jnp.dot(h.astype(jnp.bfloat16), w3_ref[...],
                preferred_element_type=jnp.float32)
    h = jnp.maximum(h + b3_ref[...], 0.0)

    # Final layer computed lane-dense: (1, 16) x (tm, 16) contracted on the
    # 16-dim -> (1, tm).  The output store is a full-width vst and the
    # writeback DMA is a dense 4*tm-byte row instead of a 1-lane column.
    out_row = jnp.einsum("ok,mk->om", w4_ref[...], h.astype(jnp.bfloat16),
                         preferred_element_type=jnp.float32)
    o_ref[...] = out_row + b4_ref[...]


def _round_up(x, m):
    return ((x + m - 1) // m) * m


def _choose_tiling(batch, tile_m):
    """Pick (tm, b_pad, n_steps): balanced tiles, multi-step grid, <8 rows pad/step."""
    n_steps = -(-batch // tile_m)                 # cdiv at the requested max tile
    # v7x megacore only shards a multi-step grid across its 2 TensorCores;
    # split further as long as each step keeps >= 512 rows of work.
    n_steps = max(n_steps, min(8, max(batch // 512, 1)))
    tm = _round_up(-(-batch // n_steps), 8)       # 8-aligned, balanced across steps
    return tm, tm * n_steps, n_steps


def mlp_forward(x, params, *, tile_m=4096):
    """x: (B, 425) float32. params: dict of f32 weights/biases. Returns (B, 1) f32."""
    B = x.shape[0]
    tm, b_pad, n_steps = _choose_tiling(B, tile_m)

    # bf16 input stream (f32 accumulation happens inside the kernel).
    x_bf = x.astype(jnp.bfloat16)
    if b_pad != B:
        # Padded rows produce garbage outputs; they are sliced off below.
        x_bf = jnp.pad(x_bf, ((0, b_pad - B), (0, 0)))

    w1 = params["w1"].astype(jnp.bfloat16)
    w2 = params["w2"].astype(jnp.bfloat16)
    w3 = params["w3"].astype(jnp.bfloat16)
    w4_row = params["w4"].T.astype(jnp.bfloat16)          # (1, 16)
    b1, b2, b3, b4 = params["b1"], params["b2"], params["b3"], params["b4"]

    flops = 2 * b_pad * (D_IN * H1 + H1 * H2 + H2 * H3 + H3 * D_OUT)
    weight_bytes = 2 * (D_IN * H1 + H1 * H2 + H2 * H3 + H3 * D_OUT) \
        + 4 * (H1 + H2 + H3 + D_OUT)
    bytes_accessed = b_pad * (2 * D_IN + 4 * D_OUT) + weight_bytes

    out = pl.pallas_call(
        _mlp_kernel,
        out_shape=jax.ShapeDtypeStruct((n_steps, tm), jnp.float32),
        grid_spec=pltpu.PrefetchScalarGridSpec(
            num_scalar_prefetch=0,
            grid=(n_steps,),
            in_specs=[
                # x: streamed per batch tile (auto double-buffered).
                pl.BlockSpec((tm, D_IN), lambda i: (i, 0)),
                # weights/biases: constant block index -> DMA'd once, resident.
                pl.BlockSpec((D_IN, H1), lambda i: (0, 0)),
                pl.BlockSpec((1, H1), lambda i: (0, 0)),
                pl.BlockSpec((H1, H2), lambda i: (0, 0)),
                pl.BlockSpec((1, H2), lambda i: (0, 0)),
                pl.BlockSpec((H2, H3), lambda i: (0, 0)),
                pl.BlockSpec((1, H3), lambda i: (0, 0)),
                pl.BlockSpec((1, H3), lambda i: (0, 0)),   # w4 as a (1, 16) row
                pl.BlockSpec((1, D_OUT), lambda i: (0, 0)),
            ],
            # lane-dense (1, tm) row per grid step.
            out_specs=pl.BlockSpec((1, tm), lambda i: (i, 0)),
        ),
        compiler_params=pltpu.CompilerParams(
            dimension_semantics=("parallel",)),
        cost_estimate=pl.CostEstimate(
            flops=flops, bytes_accessed=bytes_accessed, transcendentals=0),
    )(x_bf, w1, b1, w2, b2, w3, b3, w4_row, b4)

    return out.reshape(-1)[:B].reshape(B, D_OUT)


def init_params(key):
    """Deterministic init mirroring nn.Linear's U(-1/sqrt(fan_in), 1/sqrt(fan_in))."""
    dims = [(D_IN, H1), (H1, H2), (H2, H3), (H3, D_OUT)]
    params = {}
    for idx, (fan_in, fan_out) in enumerate(dims, start=1):
        key, kw, kb = jax.random.split(key, 3)
        bound = 1.0 / jnp.sqrt(fan_in)
        # stored as (in, out) so forward is x @ W
        params[f"w{idx}"] = jax.random.uniform(
            kw, (fan_in, fan_out), jnp.float32, -bound, bound)
        params[f"b{idx}"] = jax.random.uniform(
            kb, (1, fan_out), jnp.float32, -bound, bound)
    return params


def reference_forward(x, params):
    # Mirrors the kernel's numerics: bf16 operands, f32 accumulation, f32 bias.
    def mm(a, w):
        return jnp.dot(a.astype(jnp.bfloat16), w.astype(jnp.bfloat16),
                       preferred_element_type=jnp.float32)
    h = jnp.maximum(mm(x, params["w1"]) + params["b1"], 0.0)
    h = jnp.maximum(mm(h, params["w2"]) + params["b2"], 0.0)
    h = jnp.maximum(mm(h, params["w3"]) + params["b3"], 0.0)
    return mm(h, params["w4"]) + params["b4"]


if __name__ == "__main__":
    key = jax.random.PRNGKey(0)
    key, kx = jax.random.split(key)
    B = 8
    x = jax.random.normal(kx, (B, D_IN), jnp.float32)

    params = init_params(key)

    out = jax.block_until_ready(mlp_forward(x, params))
    ref = reference_forward(x, params)
    assert out.shape == (B, 1), out.shape
    assert jnp.allclose(out, ref, atol=5e-3, rtol=5e-3), (
        float(jnp.max(jnp.abs(out - ref))))

    # Multi-step grid + padded-batch path (B=20 rows, tm=8 -> 3 steps, 4 pad rows).
    B2 = 20
    key, kx2 = jax.random.split(key)
    x2 = jax.random.normal(kx2, (B2, D_IN), jnp.float32)
    out2 = jax.block_until_ready(mlp_forward(x2, params, tile_m=8))
    ref2 = reference_forward(x2, params)
    assert out2.shape == (B2, 1), out2.shape
    assert jnp.allclose(out2, ref2, atol=5e-3, rtol=5e-3), (
        float(jnp.max(jnp.abs(out2 - ref2))))

    print("KERNEL_OK")
</pallas_src>

<mosaic_0001>
module attributes {stable_mosaic.version = 11 : i64} {
  func.func @_mlp_kernel(%arg0: i32, %arg1: memref<8x425xbf16, #tpu.memory_space<vmem>>, %arg2: memref<425x64xbf16, #tpu.memory_space<vmem>>, %arg3: memref<1x64xf32, #tpu.memory_space<vmem>>, %arg4: memref<64x32xbf16, #tpu.memory_space<vmem>>, %arg5: memref<1x32xf32, #tpu.memory_space<vmem>>, %arg6: memref<32x16xbf16, #tpu.memory_space<vmem>>, %arg7: memref<1x16xf32, #tpu.memory_space<vmem>>, %arg8: memref<1x16xbf16, #tpu.memory_space<vmem>>, %arg9: memref<1x1xf32, #tpu.memory_space<vmem>>, %arg10: memref<1x8xf32, #tpu.memory_space<vmem>>) attributes {dimension_semantics = [#tpu.dimension_semantics<parallel>], iteration_bounds = array<i64: 1>, scalar_prefetch = 0 : i64, scratch_operands = 0 : i64, tpu.core_type = #tpu.core_type<tc>, window_params = [{transform_indices = @transform_0, window_bounds = array<i64: 8, 425>}, {pipeline_mode = #tpu.pipeline_mode<synchronous>, transform_indices = @transform_1, window_bounds = array<i64: 425, 64>}, {pipeline_mode = #tpu.pipeline_mode<synchronous>, transform_indices = @transform_2, window_bounds = array<i64: 1, 64>}, {pipeline_mode = #tpu.pipeline_mode<synchronous>, transform_indices = @transform_3, window_bounds = array<i64: 64, 32>}, {pipeline_mode = #tpu.pipeline_mode<synchronous>, transform_indices = @transform_4, window_bounds = array<i64: 1, 32>}, {pipeline_mode = #tpu.pipeline_mode<synchronous>, transform_indices = @transform_5, window_bounds = array<i64: 32, 16>}, {pipeline_mode = #tpu.pipeline_mode<synchronous>, transform_indices = @transform_6, window_bounds = array<i64: 1, 16>}, {pipeline_mode = #tpu.pipeline_mode<synchronous>, transform_indices = @transform_7, window_bounds = array<i64: 1, 16>}, {pipeline_mode = #tpu.pipeline_mode<synchronous>, transform_indices = @transform_8, window_bounds = array<i64: 1, 1>}, {transform_indices = @transform_9, window_bounds = array<i64: 1, 8>}]} {
    %c0 = arith.constant 0 : index
    %c0_0 = arith.constant 0 : index
    %0 = vector.load %arg1[%c0, %c0_0] : memref<8x425xbf16, #tpu.memory_space<vmem>>, vector<8x425xbf16>
    %c0_1 = arith.constant 0 : index
    %c0_2 = arith.constant 0 : index
    %1 = vector.load %arg2[%c0_1, %c0_2] : memref<425x64xbf16, #tpu.memory_space<vmem>>, vector<425x64xbf16>
    %cst = arith.constant dense<0.000000e+00> : vector<8x64xf32>
    %2 = tpu.matmul %0, %1, %cst {dimension_numbers = #tpu.dot_dimension_numbers<[1], [0], [0], [1], [0, 0, 1, 1], [], []>} : vector<8x425xbf16>, vector<425x64xbf16>, vector<8x64xf32> -> vector<8x64xf32>
    %c0_3 = arith.constant 0 : index
    %c0_4 = arith.constant 0 : index
    %3 = vector.load %arg3[%c0_3, %c0_4] : memref<1x64xf32, #tpu.memory_space<vmem>>, vector<1x64xf32>
    %4 = vector.broadcast %3 : vector<1x64xf32> to vector<8x64xf32>
    %5 = arith.addf %2, %4 : vector<8x64xf32>
    %cst_5 = arith.constant 0.000000e+00 : f32
    %6 = vector.broadcast %cst_5 : f32 to vector<8x64xf32>
    %7 = arith.maximumf %5, %6 : vector<8x64xf32>
    %8 = arith.truncf %7 : vector<8x64xf32> to vector<8x64xbf16>
    %c0_6 = arith.constant 0 : index
    %c0_7 = arith.constant 0 : index
    %9 = vector.load %arg4[%c0_6, %c0_7] : memref<64x32xbf16, #tpu.memory_space<vmem>>, vector<64x32xbf16>
    %cst_8 = arith.constant dense<0.000000e+00> : vector<8x32xf32>
    %10 = tpu.matmul %8, %9, %cst_8 {dimension_numbers = #tpu.dot_dimension_numbers<[1], [0], [0], [1], [0, 0, 1, 1], [], []>} : vector<8x64xbf16>, vector<64x32xbf16>, vector<8x32xf32> -> vector<8x32xf32>
    %c0_9 = arith.constant 0 : index
    %c0_10 = arith.constant 0 : index
    %11 = vector.load %arg5[%c0_9, %c0_10] : memref<1x32xf32, #tpu.memory_space<vmem>>, vector<1x32xf32>
    %12 = vector.broadcast %11 : vector<1x32xf32> to vector<8x32xf32>
    %13 = arith.addf %10, %12 : vector<8x32xf32>
    %cst_11 = arith.constant 0.000000e+00 : f32
    %14 = vector.broadcast %cst_11 : f32 to vector<8x32xf32>
    %15 = arith.maximumf %13, %14 : vector<8x32xf32>
    %16 = arith.truncf %15 : vector<8x32xf32> to vector<8x32xbf16>
    %c0_12 = arith.constant 0 : index
    %c0_13 = arith.constant 0 : index
    %17 = vector.load %arg6[%c0_12, %c0_13] : memref<32x16xbf16, #tpu.memory_space<vmem>>, vector<32x16xbf16>
    %cst_14 = arith.constant dense<0.000000e+00> : vector<8x16xf32>
    %18 = tpu.matmul %16, %17, %cst_14 {dimension_numbers = #tpu.dot_dimension_numbers<[1], [0], [0], [1], [0, 0, 1, 1], [], []>} : vector<8x32xbf16>, vector<32x16xbf16>, vector<8x16xf32> -> vector<8x16xf32>
    %c0_15 = arith.constant 0 : index
    %c0_16 = arith.constant 0 : index
    %19 = vector.load %arg7[%c0_15, %c0_16] : memref<1x16xf32, #tpu.memory_space<vmem>>, vector<1x16xf32>
    %20 = vector.broadcast %19 : vector<1x16xf32> to vector<8x16xf32>
    %21 = arith.addf %18, %20 : vector<8x16xf32>
    %cst_17 = arith.constant 0.000000e+00 : f32
    %22 = vector.broadcast %cst_17 : f32 to vector<8x16xf32>
    %23 = arith.maximumf %21, %22 : vector<8x16xf32>
    %c0_18 = arith.constant 0 : index
    %c0_19 = arith.constant 0 : index
    %24 = vector.load %arg8[%c0_18, %c0_19] : memref<1x16xbf16, #tpu.memory_space<vmem>>, vector<1x16xbf16>
    %25 = arith.truncf %23 : vector<8x16xf32> to vector<8x16xbf16>
    "tpu.trace_start"() <{level = 10 : i32, message = "ok,mk->om"}> : () -> ()
    %cst_20 = arith.constant dense<0.000000e+00> : vector<1x8xf32>
    %26 = tpu.matmul %24, %25, %cst_20 {dimension_numbers = #tpu.dot_dimension_numbers<[1], [1], [0], [0], [0, 0, 1, 0], [], []>} : vector<1x16xbf16>, vector<8x16xbf16>, vector<1x8xf32> -> vector<1x8xf32>
    "tpu.trace_stop"() : () -> ()
    %c0_21 = arith.constant 0 : index
    %c0_22 = arith.constant 0 : index
    %27 = vector.load %arg9[%c0_21, %c0_22] : memref<1x1xf32, #tpu.memory_space<vmem>>, vector<1x1xf32>
    %28 = vector.broadcast %27 : vector<1x1xf32> to vector<1x8xf32>
    %29 = arith.addf %26, %28 : vector<1x8xf32>
    %c0_23 = arith.constant 0 : index
    %c0_24 = arith.constant 0 : index
    %30 = vector.load %arg10[%c0_23, %c0_24] : memref<1x8xf32, #tpu.memory_space<vmem>>, vector<1x8xf32>
    tpu.vector_store %arg10[%c0_23, %c0_24], %29 {strides = array<i32>} : memref<1x8xf32, #tpu.memory_space<vmem>>, vector<1x8xf32>,
    return
  }
  func.func @transform_0(%arg0: i32) -> (i32, i32) {
    %c0_i32 = arith.constant 0 : i32
    %c0_i32_0 = arith.constant 0 : i32
    return %arg0, %c0_i32 : i32, i32
  }
  func.func @transform_1(%arg0: i32) -> (i32, i32) {
    %c0_i32 = arith.constant 0 : i32
    %c0_i32_0 = arith.constant 0 : i32
    %c0_i32_1 = arith.constant 0 : i32
    return %c0_i32, %c0_i32_0 : i32, i32
  }
  func.func @transform_2(%arg0: i32) -> (i32, i32) {
    %c0_i32 = arith.constant 0 : i32
    %c0_i32_0 = arith.constant 0 : i32
    %c0_i32_1 = arith.constant 0 : i32
    return %c0_i32, %c0_i32_0 : i32, i32
  }
  func.func @transform_3(%arg0: i32) -> (i32, i32) {
    %c0_i32 = arith.constant 0 : i32
    %c0_i32_0 = arith.constant 0 : i32
    %c0_i32_1 = arith.constant 0 : i32
    return %c0_i32, %c0_i32_0 : i32, i32
  }
  func.func @transform_4(%arg0: i32) -> (i32, i32) {
    %c0_i32 = arith.constant 0 : i32
    %c0_i32_0 = arith.constant 0 : i32
    %c0_i32_1 = arith.constant 0 : i32
    return %c0_i32, %c0_i32_0 : i32, i32
  }
  func.func @transform_5(%arg0: i32) -> (i32, i32) {
    %c0_i32 = arith.constant 0 : i32
    %c0_i32_0 = arith.constant 0 : i32
    %c0_i32_1 = arith.constant 0 : i32
    return %c0_i32, %c0_i32_0 : i32, i32
  }
  func.func @transform_6(%arg0: i32) -> (i32, i32) {
    %c0_i32 = arith.constant 0 : i32
    %c0_i32_0 = arith.constant 0 : i32
    %c0_i32_1 = arith.constant 0 : i32
    return %c0_i32, %c0_i32_0 : i32, i32
  }
  func.func @transform_7(%arg0: i32) -> (i32, i32) {
    %c0_i32 = arith.constant 0 : i32
    %c0_i32_0 = arith.constant 0 : i32
    %c0_i32_1 = arith.constant 0 : i32
    return %c0_i32, %c0_i32_0 : i32, i32
  }
  func.func @transform_8(%arg0: i32) -> (i32, i32) {
    %c0_i32 = arith.constant 0 : i32
    %c0_i32_0 = arith.constant 0 : i32
    %c0_i32_1 = arith.constant 0 : i32
    return %c0_i32, %c0_i32_0 : i32, i32
  }
  func.func @transform_9(%arg0: i32) -> (i32, i32) {
    %c0_i32 = arith.constant 0 : i32
    %c0_i32_0 = arith.constant 0 : i32
    return %arg0, %c0_i32 : i32, i32
  }
}

</mosaic_0001>

<llo_original>
// kernel: tpu_custom_call.1
$region0: #{tpu_custom_call.1}
  #allocation0 [shape = 'u32[]', space=smem, size = 0x4, offset = 0x4, fixed_abs, tag = 'smem constant byte address 0x4 - core index']
  #allocation1 [shape = 'u32[72,128]{1,0:T(1,128)}', space=vmem, size = 0x9000, scoped, tag = 'internal scratch']
  #allocation2 [shape = 'f32[1,1]{1,0:T(1,128)S(1)}', space=vmem, size = 0x200, scoped, tag = 'scoped memory for tpu_custom_call.1']
  %s0 = inlined_call_operand.vmem [shape: bf16[8,425], index: 0, kind: input, shape index: {}]
  %s1 = inlined_call_operand.vmem [shape: bf16[425,64], index: 1, kind: input, shape index: {}]
  %s2 = inlined_call_operand.vmem [shape: f32[1,64], index: 2, kind: input, shape index: {}]
  %s3 = inlined_call_operand.vmem [shape: bf16[64,32], index: 3, kind: input, shape index: {}]
  %s4 = inlined_call_operand.vmem [shape: f32[1,32], index: 4, kind: input, shape index: {}]
  %s5 = inlined_call_operand.vmem [shape: bf16[32,16], index: 5, kind: input, shape index: {}]
  %s6 = inlined_call_operand.vmem [shape: f32[1,16], index: 6, kind: input, shape index: {}]
  %s7 = inlined_call_operand.vmem [shape: bf16[1,16], index: 7, kind: input, shape index: {}]
  %s8 = inlined_call_operand.<no memory space> [shape: f32[1,1], index: 8, kind: input, shape index: {}]
  %s9 = inlined_call_operand.hbm [shape: f32[1,8], index: 9, kind: output, shape index: {}]
  %s10 = sld [smem:[#allocation0]]
  $region46: #{tpu_custom_call.1} parent=0
    _
  %s12 = ssub.s32 1, %s10
  %s13 = scalar_select 0, %s12, %s10
  %v14 = vstv %s8
  %15 = vst [vmem:[#allocation2] sm:$0x1] %v14
  $region1: #{tpu_custom_call.1} parent=0
    #allocation3 [shape = 'u8[512]{0}', space=vmem, size = 0x400, scoped, tag = 'output window, operand 0, single buffered']
    #allocation4 [shape = 's32[1]{0}', space=sflag, size = 0x4, scoped, tag = 'scoped memory for tpu_custom_call.1']
    %16 = vsyncpa [#allocation4], 0
    // Predicated region
    $region2: #{tpu_custom_call.1} parent=1 // pred_check
      _
    $region3: #{tpu_custom_call.1} parent=1 // pred_check_branch
      %18 = sbr.rel (0) target = $region5
    $region4: #{tpu_custom_call.1} parent=1 // pred_region
      _
    $region5: #{tpu_custom_call.1} parent=1 // pred_fallthru
      _
    // Predicated region
    $region6: #{tpu_custom_call.1} parent=1 // pred_check
      _
    $region7: #{tpu_custom_call.1} parent=1 // pred_check_branch
      %20 = sbr.rel (0) target = $region9
    $region8: #{tpu_custom_call.1} parent=1 // pred_region
      _
    $region9: #{tpu_custom_call.1} parent=1 // pred_fallthru
      _
    // Predicated region
    $region10: #{tpu_custom_call.1} parent=1 // pred_check
      _
    $region11: #{tpu_custom_call.1} parent=1 // pred_check_branch
      %22 = sbr.rel (0) target = $region13
    $region12: #{tpu_custom_call.1} parent=1 // pred_region
      _
    $region13: #{tpu_custom_call.1} parent=1 // pred_fallthru
      _
    // Predicated region
    $region14: #{tpu_custom_call.1} parent=1 // pred_check
      _
    $region15: #{tpu_custom_call.1} parent=1 // pred_check_branch
      %24 = sbr.rel (0) target = $region17
    $region16: #{tpu_custom_call.1} parent=1 // pred_region
      _
    $region17: #{tpu_custom_call.1} parent=1 // pred_fallthru
      _
    // Predicated region
    $region18: #{tpu_custom_call.1} parent=1 // pred_check
      _
    $region19: #{tpu_custom_call.1} parent=1 // pred_check_branch
      %26 = sbr.rel (0) target = $region21
    $region20: #{tpu_custom_call.1} parent=1 // pred_region
      _
    $region21: #{tpu_custom_call.1} parent=1 // pred_fallthru
      _
    // Predicated region
    $region22: #{tpu_custom_call.1} parent=1 // pred_check
      _
    $region23: #{tpu_custom_call.1} parent=1 // pred_check_branch
      %28 = sbr.rel (0) target = $region25
    $region24: #{tpu_custom_call.1} parent=1 // pred_region
      _
    $region25: #{tpu_custom_call.1} parent=1 // pred_fallthru
      _
    // Predicated region
    $region26: #{tpu_custom_call.1} parent=1 // pred_check
      _
    $region27: #{tpu_custom_call.1} parent=1 // pred_check_branch
      %30 = sbr.rel (0) target = $region29
    $region28: #{tpu_custom_call.1} parent=1 // pred_region
      _
    $region29: #{tpu_custom_call.1} parent=1 // pred_fallthru
      _
    // Predicated region
    $region30: #{tpu_custom_call.1} parent=1 // pred_check
      _
    $region31: #{tpu_custom_call.1} parent=1 // pred_check_branch
      %32 = sbr.rel (0) target = $region33
    $region32: #{tpu_custom_call.1} parent=1 // pred_region
      _
    $region33: #{tpu_custom_call.1} parent=1 // pred_fallthru
      _
    // Predicated region
    $region34: #{tpu_custom_call.1} parent=1 // pred_check
      _
    $region35: #{tpu_custom_call.1} parent=1 // pred_check_branch
      %34 = sbr.rel (0) target = $region37
    $region36: #{tpu_custom_call.1} parent=1 // pred_region
      _
    $region37: #{tpu_custom_call.1} parent=1 // pred_fallthru
      _
    %v36 = vld [vmem:[%s0] sm:$0xff]
    %v37 = vld [vmem:[%s0 + $0x8] sm:$0xff]
    %v38 = vld [vmem:[%s1] sm:$0xf]
    %v39 = vld [vmem:[%s1 + $0x4] sm:$0xf]
    %v40 = vld [vmem:[%s1 + $0x8] sm:$0xf]
    %v41 = vld [vmem:[%s1 + $0xc] sm:$0xf]
    %v42 = vld [vmem:[%s1 + $0x10] sm:$0xf]
    %v43 = vld [vmem:[%s1 + $0x14] sm:$0xf]
    %v44 = vld [vmem:[%s1 + $0x18] sm:$0xf]
    %v45 = vld [vmem:[%s1 + $0x1c] sm:$0xf]
    %v46 = vld [vmem:[%s1 + $0x20] sm:$0xf]
    %v47 = vld [vmem:[%s1 + $0x24] sm:$0xf]
    %v48 = vld [vmem:[%s1 + $0x28] sm:$0xf]
    %v49 = vld [vmem:[%s1 + $0x2c] sm:$0xf]
    %v50 = vld [vmem:[%s1 + $0x30] sm:$0xf]
    %v51 = vld [vmem:[%s1 + $0x34] sm:$0xf]
    %v52 = vld [vmem:[%s1 + $0x38] sm:$0xf]
    %v53 = vld [vmem:[%s1 + $0x3c] sm:$0xf]
    %v54 = vld [vmem:[%s1 + $0x40] sm:$0xf]
    %v55 = vld [vmem:[%s1 + $0x44] sm:$0xf]
    %v56 = vld [vmem:[%s1 + $0x48] sm:$0xf]
    %v57 = vld [vmem:[%s1 + $0x4c] sm:$0xf]
    %v58 = vld [vmem:[%s1 + $0x50] sm:$0xf]
    %v59 = vld [vmem:[%s1 + $0x54] sm:$0xf]
    %v60 = vld [vmem:[%s1 + $0x58] sm:$0xf]
    %v61 = vld [vmem:[%s1 + $0x5c] sm:$0xf]
    %v62 = vld [vmem:[%s1 + $0x60] sm:$0xf]
    %v63 = vld [vmem:[%s1 + $0x64] sm:$0xf]
    %v64 = vld [vmem:[%s1 + $0x68] sm:$0xf]
    %v65 = vld [vmem:[%s1 + $0x6c] sm:$0xf]
    %v66 = vld [vmem:[%s1 + $0x70] sm:$0xf]
    %v67 = vld [vmem:[%s1 + $0x74] sm:$0xf]
    %v68 = vld [vmem:[%s1 + $0x78] sm:$0xf]
    %v69 = vld [vmem:[%s1 + $0x7c] sm:$0xf]
    %v70 = vld [vmem:[%s1 + $0x80] sm:$0xf]
    %v71 = vld [vmem:[%s1 + $0x84] sm:$0xf]
    %v72 = vld [vmem:[%s1 + $0x88] sm:$0xf]
    %v73 = vld [vmem:[%s1 + $0x8c] sm:$0xf]
    %v74 = vld [vmem:[%s1 + $0x90] sm:$0xf]
    %v75 = vld [vmem:[%s1 + $0x94] sm:$0xf]
    %v76 = vld [vmem:[%s1 + $0x98] sm:$0xf]
    %v77 = vld [vmem:[%s1 + $0x9c] sm:$0xf]
    %v78 = vld [vmem:[%s1 + $0xa0] sm:$0xf]
    %v79 = vld [vmem:[%s1 + $0xa4] sm:$0xf]
    %v80 = vld [vmem:[%s1 + $0xa8] sm:$0xf]
    %v81 = vld [vmem:[%s1 + $0xac] sm:$0xf]
    %v82 = vld [vmem:[%s1 + $0xb0] sm:$0xf]
    %v83 = vld [vmem:[%s1 + $0xb4] sm:$0xf]
    %v84 = vld [vmem:[%s1 + $0xb8] sm:$0xf]
    %v85 = vld [vmem:[%s1 + $0xbc] sm:$0xf]
    %v86 = vld [vmem:[%s1 + $0xc0] sm:$0xf]
    %v87 = vld [vmem:[%s1 + $0xc4] sm:$0xf]
    %v88 = vld [vmem:[%s1 + $0xc8] sm:$0xf]
    %v89 = vld [vmem:[%s1 + $0xcc] sm:$0xf]
    %v90 = vld [vmem:[%s1 + $0xd0] sm:$0xf]
    %v91 = vld [vmem:[%s1 + $0xd4] sm:$0x1]
    %v92 = vld [vmem:[%s2] sm:$0x1]
    %v94 = vperm.slane %v92, 0
    %v98 = vunpack.c.l.b16 %v36
    %v99 = vunpack.c.h.b16 %v36
    %v100 = vunpack.c.l.b16 %v37
    %v101 = vunpack.c.h.b16 %v37
    %v102 = vpack.c.b16 %v98, %v98
    %v103 = vpack.c.b16 %v99, %v99
    %v104 = vpack.c.b16 %v100, %v100
    %v105 = vpack.c.b16 %v101, %v101
    %v163 = vunpack.c.l.b16 %v38
    %v164 = vunpack.c.l.b16 %v39
    %v165 = vunpack.c.l.b16 %v40
    %v166 = vunpack.c.l.b16 %v41
    %v167 = vunpack.c.l.b16 %v42
    %v168 = vunpack.c.l.b16 %v43
    %v169 = vunpack.c.l.b16 %v44
    %v170 = vunpack.c.l.b16 %v45
    %v171 = vunpack.c.l.b16 %v46
    %v172 = vunpack.c.l.b16 %v47
    %v173 = vunpack.c.l.b16 %v48
    %v174 = vunpack.c.l.b16 %v49
    %v175 = vunpack.c.l.b16 %v50
    %v176 = vunpack.c.l.b16 %v51
    %v177 = vunpack.c.l.b16 %v52
    %v178 = vunpack.c.l.b16 %v53
    %v179 = vunpack.c.l.b16 %v54
    %v180 = vunpack.c.l.b16 %v55
    %v181 = vunpack.c.l.b16 %v56
    %v182 = vunpack.c.l.b16 %v57
    %v183 = vunpack.c.l.b16 %v58
    %v184 = vunpack.c.l.b16 %v59
    %v185 = vunpack.c.l.b16 %v60
    %v186 = vunpack.c.l.b16 %v61
    %v187 = vunpack.c.l.b16 %v62
    %v188 = vunpack.c.l.b16 %v63
    %v189 = vunpack.c.l.b16 %v64
    %v190 = vunpack.c.l.b16 %v65
    %v191 = vunpack.c.l.b16 %v66
    %v192 = vunpack.c.l.b16 %v67
    %v193 = vunpack.c.l.b16 %v68
    %v194 = vunpack.c.l.b16 %v69
    %v195 = vunpack.c.l.b16 %v70
    %v196 = vunpack.c.l.b16 %v71
    %v197 = vunpack.c.l.b16 %v72
    %v198 = vunpack.c.l.b16 %v73
    %v199 = vunpack.c.l.b16 %v74
    %v200 = vunpack.c.l.b16 %v75
    %v201 = vunpack.c.l.b16 %v76
    %v202 = vunpack.c.l.b16 %v77
    %v203 = vunpack.c.l.b16 %v78
    %v204 = vunpack.c.l.b16 %v79
    %v205 = vunpack.c.l.b16 %v80
    %v206 = vunpack.c.l.b16 %v81
    %v207 = vunpack.c.l.b16 %v82
    %v208 = vunpack.c.l.b16 %v83
    %v209 = vunpack.c.l.b16 %v84
    %v210 = vunpack.c.l.b16 %v85
    %v211 = vunpack.c.l.b16 %v86
    %v212 = vunpack.c.l.b16 %v87
    %v213 = vunpack.c.l.b16 %v88
    %v214 = vunpack.c.l.b16 %v89
    %v215 = vunpack.c.l.b16 %v90
    %v216 = vunpack.c.l.b16 %v91
    %v217 = vpack.c.b16 %v164, %v163
    %v218 = vpack.c.b16 %v166, %v165
    %v219 = vpack.c.b16 %v168, %v167
    %v220 = vpack.c.b16 %v170, %v169
    %v221 = vpack.c.b16 %v172, %v171
    %v222 = vpack.c.b16 %v174, %v173
    %v223 = vpack.c.b16 %v176, %v175
    %v224 = vpack.c.b16 %v178, %v177
    %v225 = vpack.c.b16 %v180, %v179
    %v226 = vpack.c.b16 %v182, %v181
    %v227 = vpack.c.b16 %v184, %v183
    %v228 = vpack.c.b16 %v186, %v185
    %v229 = vpack.c.b16 %v188, %v187
    %v230 = vpack.c.b16 %v190, %v189
    %v231 = vpack.c.b16 %v192, %v191
    %v232 = vpack.c.b16 %v194, %v193
    %v233 = vpack.c.b16 %v196, %v195
    %v234 = vpack.c.b16 %v198, %v197
    %v235 = vpack.c.b16 %v200, %v199
    %v236 = vpack.c.b16 %v202, %v201
    %v237 = vpack.c.b16 %v204, %v203
    %v238 = vpack.c.b16 %v206, %v205
    %v239 = vpack.c.b16 %v208, %v207
    %v240 = vpack.c.b16 %v210, %v209
    %v241 = vpack.c.b16 %v212, %v211
    %v242 = vpack.c.b16 %v214, %v213
    %v243 = vpack.c.b16 %v216, %v215
    %vm270 = vcmask 334848
    %v272 = vsel %vm270, %v105, 0
    %vm274 = vcmask 1043456
    %vm275 = vcmask 1044480
    %v276 = vsel %vm274, 4294967295, 65535
    %v277 = vsel %vm275, %v276, 0
    %v279 = vand.u32 %v243, %v277
    %281 = vmatpush.bf16.msra.mxu0 %v224
    %282 = vmatpush.bf16.msra.mxu0 %v223
    %283 = vmatpush.bf16.msra.mxu0 %v222
    %284 = vmatpush.bf16.msra.mxu0 %v221
    %285 = vmatpush.bf16.msra.mxu0 %v220
    %286 = vmatpush.bf16.msra.mxu0 %v219
    %287 = vmatpush.bf16.msra.mxu0 %v218
    %288 = vmatpush.bf16.msra.mxu0 %v217
    %289 = vmatmul.bf16.gmra.mxu0 %v102
    %v290 = vpop.f32.mrf.mxu0
    %v291 = vadd.f32 %v94, %v290
    %v292 = vpop.f32.mrf.mxu0
    %293 = vdwg.mxu0
    %294 = vmatpush.bf16.msra.mxu0 %v232
    %295 = vmatpush.bf16.msra.mxu0 %v231
    %296 = vmatpush.bf16.msra.mxu0 %v230
    %297 = vmatpush.bf16.msra.mxu0 %v229
    %298 = vmatpush.bf16.msra.mxu0 %v228
    %299 = vmatpush.bf16.msra.mxu0 %v227
    %300 = vmatpush.bf16.msra.mxu0 %v226
    %301 = vmatpush.bf16.msra.mxu0 %v225
    %302 = vmatmul.bf16.gmra.mxu0 %v103
    %v303 = vpop.f32.mrf.mxu0
    %v304 = vadd.f32 %v291, %v303
    %v305 = vpop.f32.mrf.mxu0
    %306 = vdwg.mxu0
    %307 = vmatpush.bf16.msra.mxu0 %v240
    %308 = vmatpush.bf16.msra.mxu0 %v239
    %309 = vmatpush.bf16.msra.mxu0 %v238
    %310 = vmatpush.bf16.msra.mxu0 %v237
    %311 = vmatpush.bf16.msra.mxu0 %v236
    %312 = vmatpush.bf16.msra.mxu0 %v235
    %313 = vmatpush.bf16.msra.mxu0 %v234
    %314 = vmatpush.bf16.msra.mxu0 %v233
    %315 = vmatmul.bf16.gmra.mxu0 %v104
    %v316 = vpop.f32.mrf.mxu0
    %v317 = vadd.f32 %v304, %v316
    %v318 = vpop.f32.mrf.mxu0
    %319 = vdwg.mxu0
    %320 = vmatpush.bf16.msra.mxu0 0
    %321 = vmatpush.bf16.msra.mxu0 0
    %322 = vmatpush.bf16.msra.mxu0 0
    %323 = vmatpush.bf16.msra.mxu0 0
    %324 = vmatpush.bf16.msra.mxu0 0
    %325 = vmatpush.bf16.msra.mxu0 %v279
    %326 = vmatpush.bf16.msra.mxu0 %v242
    %327 = vmatpush.bf16.msra.mxu0 %v241
    %328 = vmatmul.bf16.gmra.mxu0 %v272
    %v329 = vpop.f32.mrf.mxu0
    %v330 = vadd.f32 %v317, %v329
    %v331 = vpop.f32.mrf.mxu0
    %332 = vdwg.mxu0
    %v333 = vmax.f32 %v330, 0.0
    %v334 = vpack.c.bf16 %v333, %v333
    %v335 = vld [vmem:[%s3] sm:$0xf]
    %v336 = vld [vmem:[%s3 + $0x4] sm:$0xf]
    %v337 = vld [vmem:[%s3 + $0x8] sm:$0xf]
    %v338 = vld [vmem:[%s3 + $0xc] sm:$0xf]
    %v339 = vld [vmem:[%s3 + $0x10] sm:$0xf]
    %v340 = vld [vmem:[%s3 + $0x14] sm:$0xf]
    %v341 = vld [vmem:[%s3 + $0x18] sm:$0xf]
    %v342 = vld [vmem:[%s3 + $0x1c] sm:$0xf]
    %v343 = vld [vmem:[%s4] sm:$0x1]
    %v345 = vperm.slane %v343, 0
    %v355 = vunpack.c.l.b16 %v335
    %v356 = vunpack.c.l.b16 %v336
    %v357 = vunpack.c.l.b16 %v337
    %v358 = vunpack.c.l.b16 %v338
    %v359 = vunpack.c.l.b16 %v339
    %v360 = vunpack.c.l.b16 %v340
    %v361 = vunpack.c.l.b16 %v341
    %v362 = vunpack.c.l.b16 %v342
    %v363 = vpack.c.b16 %v356, %v355
    %v364 = vpack.c.b16 %v358, %v357
    %v365 = vpack.c.b16 %v360, %v359
    %v366 = vpack.c.b16 %v362, %v361
    %vm371 = vcmask 523264
    %v373 = vsel %vm371, %v334, 0
    %375 = vmatpush.bf16.msra.mxu0 0
    %376 = vmatpush.bf16.msra.mxu0 0
    %377 = vmatpush.bf16.msra.mxu0 0
    %378 = vmatpush.bf16.msra.mxu0 0
    %379 = vmatpush.bf16.msra.mxu0 %v366
    %380 = vmatpush.bf16.msra.mxu0 %v365
    %381 = vmatpush.bf16.msra.mxu0 %v364
    %382 = vmatpush.bf16.msra.mxu0 %v363
    %383 = vmatmul.bf16.gmra.mxu0 %v373
    %v384 = vpop.f32.mrf.mxu0
    %v385 = vadd.f32 %v345, %v384
    %v386 = vpop.f32.mrf.mxu0
    %387 = vdwg.mxu0
    %v388 = vmax.f32 %v385, 0.0
    %v389 = vpack.c.bf16 %v388, %v388
    %v390 = vld [vmem:[%s5] sm:$0xf]
    %v391 = vld [vmem:[%s5 + $0x4] sm:$0xf]
    %v392 = vld [vmem:[%s5 + $0x8] sm:$0xf]
    %v393 = vld [vmem:[%s5 + $0xc] sm:$0xf]
    %v394 = vld [vmem:[%s6] sm:$0x1]
    %v396 = vperm.slane %v394, 0
    %v402 = vunpack.c.l.b16 %v390
    %v403 = vunpack.c.l.b16 %v391
    %v404 = vunpack.c.l.b16 %v392
    %v405 = vunpack.c.l.b16 %v393
    %v406 = vpack.c.b16 %v403, %v402
    %v407 = vpack.c.b16 %v405, %v404
    %vm410 = vcmask 261120
    %v412 = vsel %vm410, %v389, 0
    %414 = vmatpush.bf16.msra.mxu0 0
    %415 = vmatpush.bf16.msra.mxu0 0
    %416 = vmatpush.bf16.msra.mxu0 0
    %417 = vmatpush.bf16.msra.mxu0 0
    %418 = vmatpush.bf16.msra.mxu0 0
    %419 = vmatpush.bf16.msra.mxu0 0
    %420 = vmatpush.bf16.msra.mxu0 %v407
    %421 = vmatpush.bf16.msra.mxu0 %v406
    %422 = vmatmul.bf16.gmra.mxu0 %v412
    %v423 = vpop.f32.mrf.mxu0
    %v424 = vadd.f32 %v396, %v423
    %v425 = vpop.f32.mrf.mxu0
    %426 = vdwg.mxu0
    %v427 = vmax.f32 %v424, 0.0
    %v428 = vld [vmem:[%s7] sm:$0x1]
    %v429 = vpack.c.bf16 %v427, %v427
    %v430 = vld [vmem:[#allocation2] sm:$0x1]
    %432 = vset.pattern.permute.xlu0 0
    %433 = vperm.xlu0 %432, %v430
    %v434 = vpop.permute.xlu0 %433
    %v436 = vperm.slane %v434, 0
    %vm437 = vcmask 130048
    %v439 = vsel %vm437, %v428, 0
    %v442 = vsel %vm437, %v429, 0
    %444 = vmatpush.bf16.xpose.msra.mxu0 0
    %445 = vmatpush.bf16.xpose.msra.mxu0 0
    %446 = vmatpush.bf16.xpose.msra.mxu0 0
    %447 = vmatpush.bf16.xpose.msra.mxu0 0
    %448 = vmatpush.bf16.xpose.msra.mxu0 0
    %449 = vmatpush.bf16.xpose.msra.mxu0 0
    %450 = vmatpush.bf16.xpose.msra.mxu0 0
    %451 = vmatpush.bf16.xpose.msra.mxu0 %v442
    %452 = vmatmul.bf16.gmra.mxu0 %v439
    %v453 = vpop.f32.mrf.mxu0
    %v454 = vadd.f32 %v436, %v453
    %v455 = vpop.f32.mrf.mxu0
    %456 = vdwg.mxu0
    %vm457 = vcmask 57344
    %458 = vst.msk [vmem:[#allocation3] sm:$0x1] %vm457, %v454
    // Predicated region
    $region38: #{tpu_custom_call.1} parent=1 // pred_check
      _
    $region39: #{tpu_custom_call.1} parent=1 // pred_check_branch
      %460 = sbr.rel (0) target = $region41
    $region40: #{tpu_custom_call.1} parent=1 // pred_region
      %462 = vsyncadd [#allocation4], 0
      %s464 = sshll.u32 [#allocation3], 4
      %s465 = int_to_ptr.vmem [resolvable:$true] %s464
      %s466 = sshll.u32 %s9, 4
      %s467 = int_to_ptr.hbm [resolvable:$true] %s466
      %469 = dma.vmem_to_hbm [thread:$0]  %s465, 16, %s467, [#allocation4]
    $region41: #{tpu_custom_call.1} parent=1 // pred_fallthru
      _
    // Predicated region
    $region42: #{tpu_custom_call.1} parent=1 // pred_check
      _
    $region43: #{tpu_custom_call.1} parent=1 // pred_check_branch
      %471 = sbr.rel (0) target = $region45
    $region44: #{tpu_custom_call.1} parent=1 // pred_region
      %473 = dma.done [#allocation4], 16
    $region45: #{tpu_custom_call.1} parent=1 // pred_fallthru
      _
    %474 = vsyncpa [#allocation4], 1

</llo_original>
